<compile_context>
chip_gen: v7x
topology: tpu7x:2x2x1
jax: 0.10.0
libtpu: 0.0.40
codegen_flags: <defaults>
</compile_context>

<pallas_src>
import functools

import jax
import jax.numpy as jnp
from jax.experimental import pallas as pl
from jax.experimental.pallas import tpu as pltpu

_BN_EPS = 1e-5
_NORM_EPS_SQ = 1e-24  # F.normalize eps=1e-12, squared (we use rsqrt on sum-of-squares)


# ----------------------------- fused kernel ----------------------------------


def _fused_kernel(x_ref, w1_ref, b1_ref, gamma_ref, beta_ref, w2_ref, o_ref,
                  h_scr, scale_scr, shift_scr, *, tile_n, inv_n, n_pad):
    """grid=(2, n_tiles).  Phase 0: h = x@w1+b1 (kept in VMEM, bf16) + BN stats.
    Phase 1: fold BN into scale/shift once, then FMA -> ReLU -> @w2 -> normalize."""
    phase = pl.program_id(0)
    i = pl.program_id(1)
    row0 = pl.multiple_of(i * tile_n, tile_n)

    @pl.when(phase == 0)
    def _():
        @pl.when(i == 0)
        def _():
            scale_scr[...] = jnp.zeros_like(scale_scr)   # running sum
            shift_scr[...] = jnp.zeros_like(shift_scr)   # running sum of squares

        h = jnp.dot(x_ref[...], w1_ref[...],
                    preferred_element_type=jnp.float32) + b1_ref[...]
        scale_scr[...] += jnp.sum(h, axis=0, keepdims=True)
        shift_scr[...] += jnp.sum(h * h, axis=0, keepdims=True)
        h_scr[pl.ds(row0, tile_n), :] = h.astype(h_scr.dtype)

    @pl.when(phase == 1)
    def _():
        @pl.when(i == 0)
        def _():
            s = scale_scr[...]
            ss = shift_scr[...]
            if n_pad:  # static: zero-padded batch rows each contributed exactly b1
                b1 = b1_ref[...]
                s = s - n_pad * b1
                ss = ss - n_pad * (b1 * b1)
            mean = s * inv_n
            var = jnp.maximum(ss * inv_n - mean * mean, 0.0)
            scale = gamma_ref[...] * jax.lax.rsqrt(var + _BN_EPS)
            scale_scr[...] = scale                      # reuse scratch: now "scale"
            shift_scr[...] = beta_ref[...] - mean * scale  # now "shift"

        hn = jnp.maximum(
            h_scr[pl.ds(row0, tile_n), :] * scale_scr[...] + shift_scr[...], 0.0)
        y = jnp.dot(hn.astype(jnp.bfloat16), w2_ref[...],
                    preferred_element_type=jnp.float32)
        ssq = jnp.sum(y * y, axis=1, keepdims=True)
        o_ref[...] = (y * jax.lax.rsqrt(jnp.maximum(ssq, _NORM_EPS_SQ))).astype(o_ref.dtype)


# ----------------------------- two-pass fallback ------------------------------


def _pass_a_kernel(x_ref, w1_ref, b1_ref, gamma_ref, beta_ref,
                   h_ref, scale_ref, shift_ref, *, inv_n, n_pad):
    """h = x@w1+b1 (stored bf16); accumulate sum/sumsq; fold BN on last tile."""
    i = pl.program_id(0)

    @pl.when(i == 0)
    def _():
        scale_ref[...] = jnp.zeros_like(scale_ref)   # running sum
        shift_ref[...] = jnp.zeros_like(shift_ref)   # running sum of squares

    h = jnp.dot(x_ref[...], w1_ref[...],
                preferred_element_type=jnp.float32) + b1_ref[...]
    h_ref[...] = h.astype(h_ref.dtype)
    scale_ref[...] += jnp.sum(h, axis=0, keepdims=True)
    shift_ref[...] += jnp.sum(h * h, axis=0, keepdims=True)

    @pl.when(i == pl.num_programs(0) - 1)
    def _():
        s = scale_ref[...]
        ss = shift_ref[...]
        if n_pad:
            b1 = b1_ref[...]
            s = s - n_pad * b1
            ss = ss - n_pad * (b1 * b1)
        mean = s * inv_n
        var = jnp.maximum(ss * inv_n - mean * mean, 0.0)
        scale = gamma_ref[...] * jax.lax.rsqrt(var + _BN_EPS)
        scale_ref[...] = scale
        shift_ref[...] = beta_ref[...] - mean * scale


def _pass_b_kernel(h_ref, scale_ref, shift_ref, w2_ref, o_ref):
    """Folded BN FMA -> ReLU -> @w2 -> L2 normalize via rsqrt."""
    hn = jnp.maximum(h_ref[...] * scale_ref[...] + shift_ref[...], 0.0)
    y = jnp.dot(hn.astype(jnp.bfloat16), w2_ref[...],
                preferred_element_type=jnp.float32)
    ssq = jnp.sum(y * y, axis=1, keepdims=True)
    o_ref[...] = (y * jax.lax.rsqrt(jnp.maximum(ssq, _NORM_EPS_SQ))).astype(o_ref.dtype)


# ----------------------------- wrapper ----------------------------------------


def _round_up(x, m):
    return ((x + m - 1) // m) * m


def _pad_to(a, shape, value=0.0):
    pads = [(0, t - s) for s, t in zip(a.shape, shape)]
    return jnp.pad(a, pads, constant_values=value)


def _vmem_cap_bytes():
    try:
        return int(pltpu.get_tpu_info().vmem_capacity_bytes)
    except Exception:
        return 64 * 1024 * 1024   # conservative (v7x physical VMEM)


def projection_head(x, w1, b1, gamma, beta, w2, *, tile_n=512, force_two_pass=False):
    """x: (N, D_in) f32. w1: (D_in, D_hid), b1/gamma/beta: (D_hid,), w2: (D_hid, D_out)."""
    assert tile_n > 0
    n, d_in = x.shape
    d_hid = w1.shape[1]
    d_out = w2.shape[1]

    d_in_p = _round_up(d_in, 128)
    d_hid_p = _round_up(d_hid, 128)
    d_out_p = _round_up(d_out, 128)
    tn = min(_round_up(tile_n, 16), _round_up(n, 16))
    n_p = _round_up(n, tn)
    n_tiles = n_p // tn
    n_pad = n_p - n
    inv_n = 1.0 / n

    # Pad to lane-dense shapes; cast matmul operands to bf16 (MXU-native).
    x_p = _pad_to(x, (n_p, d_in_p)).astype(jnp.bfloat16)
    w1_p = _pad_to(w1, (d_in_p, d_hid_p)).astype(jnp.bfloat16)
    w2_p = _pad_to(w2, (d_hid_p, d_out_p)).astype(jnp.bfloat16)
    b1_p = _pad_to(b1.reshape(1, -1), (1, d_hid_p)).astype(jnp.float32)
    gamma_p = _pad_to(gamma.reshape(1, -1), (1, d_hid_p), value=1.0).astype(jnp.float32)
    beta_p = _pad_to(beta.reshape(1, -1), (1, d_hid_p)).astype(jnp.float32)

    cap = _vmem_cap_bytes()

    # Estimated VMEM footprint of the fused call (pipelined blocks double-buffered,
    # scratch single-buffered).
    fused_bytes = (2 * tn * d_in_p * 2            # x tile
                   + 2 * d_in_p * d_hid_p * 2     # w1 (resident)
                   + 2 * 3 * d_hid_p * 4          # b1 / gamma / beta
                   + 2 * d_hid_p * d_out_p * 2    # w2 (resident)
                   + 2 * tn * d_out_p * 4         # out tile
                   + n_p * d_hid_p * 2            # h scratch (bf16, whole batch)
                   + 2 * d_hid_p * 4)             # stat scratch
    use_fused = (not force_two_pass) and fused_bytes <= int(0.75 * cap)

    if use_fused:
        # -------- single fused call: h never leaves VMEM ----------------------
        out_p = pl.pallas_call(
            functools.partial(_fused_kernel, tile_n=tn, inv_n=inv_n, n_pad=n_pad),
            out_shape=jax.ShapeDtypeStruct((n_p, d_out_p), jnp.float32),
            grid=(2, n_tiles),
            in_specs=[
                # x: real tiles during phase 0, pinned to block 0 during phase 1.
                pl.BlockSpec((tn, d_in_p), lambda p, i: ((1 - p) * i, 0)),
                pl.BlockSpec((d_in_p, d_hid_p), lambda p, i: (0, 0)),   # resident
                pl.BlockSpec((1, d_hid_p), lambda p, i: (0, 0)),
                pl.BlockSpec((1, d_hid_p), lambda p, i: (0, 0)),
                pl.BlockSpec((1, d_hid_p), lambda p, i: (0, 0)),
                pl.BlockSpec((d_hid_p, d_out_p), lambda p, i: (0, 0)),  # resident
            ],
            # out: pinned to block 0 during phase 0, real tiles during phase 1.
            out_specs=pl.BlockSpec((tn, d_out_p), lambda p, i: (p * i, 0)),
            scratch_shapes=[pltpu.VMEM((n_p, d_hid_p), jnp.bfloat16),   # h
                            pltpu.VMEM((1, d_hid_p), jnp.float32),      # sum -> scale
                            pltpu.VMEM((1, d_hid_p), jnp.float32)],     # sumsq -> shift
            compiler_params=pltpu.CompilerParams(
                dimension_semantics=("arbitrary", "arbitrary"),
                vmem_limit_bytes=int(min(cap, fused_bytes + 16 * 1024 * 1024))),
        )(x_p, w1_p, b1_p, gamma_p, beta_p, w2_p)
        return out_p[:n, :d_out]

    # -------- fallback: two passes, h round-trips HBM as bf16 -----------------
    a_bytes = (2 * tn * d_in_p * 2 + 2 * d_in_p * d_hid_p * 2
               + 2 * 3 * d_hid_p * 4 + 2 * tn * d_hid_p * 2 + 2 * 2 * d_hid_p * 4)
    h, scale, shift = pl.pallas_call(
        functools.partial(_pass_a_kernel, inv_n=inv_n, n_pad=n_pad),
        out_shape=(jax.ShapeDtypeStruct((n_p, d_hid_p), jnp.bfloat16),
                   jax.ShapeDtypeStruct((1, d_hid_p), jnp.float32),
                   jax.ShapeDtypeStruct((1, d_hid_p), jnp.float32)),
        grid=(n_tiles,),
        in_specs=[pl.BlockSpec((tn, d_in_p), lambda i: (i, 0)),
                  pl.BlockSpec((d_in_p, d_hid_p), lambda i: (0, 0)),    # resident
                  pl.BlockSpec((1, d_hid_p), lambda i: (0, 0)),
                  pl.BlockSpec((1, d_hid_p), lambda i: (0, 0)),
                  pl.BlockSpec((1, d_hid_p), lambda i: (0, 0))],
        out_specs=(pl.BlockSpec((tn, d_hid_p), lambda i: (i, 0)),
                   pl.BlockSpec((1, d_hid_p), lambda i: (0, 0)),        # accumulator
                   pl.BlockSpec((1, d_hid_p), lambda i: (0, 0))),       # accumulator
        compiler_params=pltpu.CompilerParams(
            dimension_semantics=("arbitrary",),
            vmem_limit_bytes=int(min(cap, a_bytes + 16 * 1024 * 1024))),
    )(x_p, w1_p, b1_p, gamma_p, beta_p)

    b_bytes = (2 * tn * d_hid_p * 2 + 2 * 2 * d_hid_p * 4
               + 2 * d_hid_p * d_out_p * 2 + 2 * tn * d_out_p * 4)
    out_p = pl.pallas_call(
        _pass_b_kernel,
        out_shape=jax.ShapeDtypeStruct((n_p, d_out_p), jnp.float32),
        grid=(n_tiles,),
        in_specs=[pl.BlockSpec((tn, d_hid_p), lambda i: (i, 0)),
                  pl.BlockSpec((1, d_hid_p), lambda i: (0, 0)),
                  pl.BlockSpec((1, d_hid_p), lambda i: (0, 0)),
                  pl.BlockSpec((d_hid_p, d_out_p), lambda i: (0, 0))],  # resident
        out_specs=pl.BlockSpec((tn, d_out_p), lambda i: (i, 0)),
        compiler_params=pltpu.CompilerParams(
            dimension_semantics=("parallel",),
            vmem_limit_bytes=int(min(cap, b_bytes + 16 * 1024 * 1024))),
    )(h, scale, shift, w2_p)

    return out_p[:n, :d_out]


# ----------------------------- references -------------------------------------


def reference_f32(x, w1, b1, gamma, beta, w2):
    """Pure f32 reference matching PyTorch training-mode forward."""
    h = x @ w1 + b1.reshape(1, -1)
    mean = jnp.mean(h, axis=0, keepdims=True)
    var = jnp.mean((h - mean) ** 2, axis=0, keepdims=True)
    h = (h - mean) / jnp.sqrt(var + _BN_EPS) * gamma.reshape(1, -1) + beta.reshape(1, -1)
    h = jnp.maximum(h, 0.0)
    y = h @ w2
    norm = jnp.sqrt(jnp.sum(y * y, axis=1, keepdims=True))
    return y / jnp.maximum(norm, 1e-12)


def reference_kernel_numerics(x, w1, b1, gamma, beta, w2):
    """Reference mimicking kernel numerics (bf16 MXU operands, bf16-stored h,
    sum/sumsq variance, folded scale/shift, rsqrt normalize)."""
    n = x.shape[0]
    h = jnp.dot(x.astype(jnp.bfloat16), w1.astype(jnp.bfloat16),
                preferred_element_type=jnp.float32) + b1.reshape(1, -1)
    mean = jnp.sum(h, axis=0, keepdims=True) / n
    var = jnp.maximum(jnp.sum(h * h, axis=0, keepdims=True) / n - mean * mean, 0.0)
    scale = gamma.reshape(1, -1) * jax.lax.rsqrt(var + _BN_EPS)
    shift = beta.reshape(1, -1) - mean * scale
    h_q = h.astype(jnp.bfloat16).astype(jnp.float32)   # h is stored bf16 in the kernel
    hn = jnp.maximum(h_q * scale + shift, 0.0)
    y = jnp.dot(hn.astype(jnp.bfloat16), w2.astype(jnp.bfloat16),
                preferred_element_type=jnp.float32)
    ssq = jnp.sum(y * y, axis=1, keepdims=True)
    return y * jax.lax.rsqrt(jnp.maximum(ssq, _NORM_EPS_SQ))


# ----------------------------- test --------------------------------------------


if __name__ == "__main__":
    # Small shapes consistent with ProjectionHead(input_dim, hidden_dim, output_dim).
    # Non-multiples of (16, 128) exercise the padding + analytic-correction paths;
    # tile_n=16 exercises the multi-tile batch grid and both phases of the fused call.
    N, D_IN, D_HID, D_OUT = 40, 192, 160, 48

    key = jax.random.PRNGKey(0)
    k_x, k_w1, k_b1, k_g, k_bt, k_w2 = jax.random.split(key, 6)

    x = jax.random.normal(k_x, (N, D_IN), dtype=jnp.float32)
    w1 = jax.random.normal(k_w1, (D_IN, D_HID), dtype=jnp.float32) / jnp.sqrt(float(D_IN))
    b1 = 0.01 * jax.random.normal(k_b1, (D_HID,), dtype=jnp.float32)
    gamma = 1.0 + 0.1 * jax.random.normal(k_g, (D_HID,), dtype=jnp.float32)
    beta = 0.1 * jax.random.normal(k_bt, (D_HID,), dtype=jnp.float32)
    w2 = jax.random.normal(k_w2, (D_HID, D_OUT), dtype=jnp.float32) / jnp.sqrt(float(D_HID))

    ref_tight = reference_kernel_numerics(x, w1, b1, gamma, beta, w2)
    ref_f32 = reference_f32(x, w1, b1, gamma, beta, w2)

    # Fused single-call path (h never leaves VMEM), multi-tile batch grid.
    out_fused = jax.block_until_ready(
        projection_head(x, w1, b1, gamma, beta, w2, tile_n=16))
    assert out_fused.shape == (N, D_OUT)
    assert jnp.allclose(out_fused, ref_tight, atol=2e-3, rtol=2e-3), \
        "fused: mismatch vs bf16-matched reference"
    assert jnp.allclose(out_fused, ref_f32, atol=5e-2, rtol=5e-2), \
        "fused: mismatch vs f32 reference"

    # Two-pass fallback path (h round-trips HBM as bf16).
    out_2p = jax.block_until_ready(
        projection_head(x, w1, b1, gamma, beta, w2, tile_n=16, force_two_pass=True))
    assert jnp.allclose(out_2p, ref_tight, atol=2e-3, rtol=2e-3), \
        "two-pass: mismatch vs bf16-matched reference"
    assert jnp.allclose(out_2p, ref_f32, atol=5e-2, rtol=5e-2), \
        "two-pass: mismatch vs f32 reference"

    # Default tile size (single batch tile for this small N).
    out_def = jax.block_until_ready(projection_head(x, w1, b1, gamma, beta, w2))
    assert jnp.allclose(out_def, ref_tight, atol=2e-3, rtol=2e-3), \
        "default-tile: mismatch vs bf16-matched reference"

    print("KERNEL_OK")
</pallas_src>

<mosaic_0001>
module attributes {stable_mosaic.version = 11 : i64} {
  func.func @_fused_kernel(%arg0: i32, %arg1: i32, %arg2: memref<16x256xbf16, #tpu.memory_space<vmem>>, %arg3: memref<256x256xbf16, #tpu.memory_space<vmem>>, %arg4: memref<1x256xf32, #tpu.memory_space<vmem>>, %arg5: memref<1x256xf32, #tpu.memory_space<vmem>>, %arg6: memref<1x256xf32, #tpu.memory_space<vmem>>, %arg7: memref<256x128xbf16, #tpu.memory_space<vmem>>, %arg8: memref<16x128xf32, #tpu.memory_space<vmem>>, %arg9: memref<48x256xbf16, #tpu.memory_space<vmem>>, %arg10: memref<1x256xf32, #tpu.memory_space<vmem>>, %arg11: memref<1x256xf32, #tpu.memory_space<vmem>>) attributes {dimension_semantics = [#tpu.dimension_semantics<arbitrary>, #tpu.dimension_semantics<arbitrary>], iteration_bounds = array<i64: 2, 3>, scalar_prefetch = 0 : i64, scratch_operands = 3 : i64, tpu.core_type = #tpu.core_type<tc>, window_params = [{transform_indices = @transform_0, window_bounds = array<i64: 16, 256>}, {pipeline_mode = #tpu.pipeline_mode<synchronous>, transform_indices = @transform_1, window_bounds = array<i64: 256, 256>}, {pipeline_mode = #tpu.pipeline_mode<synchronous>, transform_indices = @transform_2, window_bounds = array<i64: 1, 256>}, {pipeline_mode = #tpu.pipeline_mode<synchronous>, transform_indices = @transform_3, window_bounds = array<i64: 1, 256>}, {pipeline_mode = #tpu.pipeline_mode<synchronous>, transform_indices = @transform_4, window_bounds = array<i64: 1, 256>}, {pipeline_mode = #tpu.pipeline_mode<synchronous>, transform_indices = @transform_5, window_bounds = array<i64: 256, 128>}, {transform_indices = @transform_6, window_bounds = array<i64: 16, 128>}]} {
    %c16_i32 = arith.constant 16 : i32
    %0 = arith.muli %arg1, %c16_i32 : i32
    %1 = tpu.assume_multiple %0, 16 : i32
    %c0_i32 = arith.constant 0 : i32
    %2 = arith.cmpi eq, %arg0, %c0_i32 : i32
    %3 = arith.extui %2 : i1 to i32
    %c0_i32_0 = arith.constant 0 : i32
    %4 = arith.cmpi ne, %3, %c0_i32_0 : i32
    scf.if %4 {
      %c0_i32_2 = arith.constant 0 : i32
      %8 = arith.cmpi eq, %arg1, %c0_i32_2 : i32
      %9 = arith.extui %8 : i1 to i32
      %c0_i32_3 = arith.constant 0 : i32
      %10 = arith.cmpi ne, %9, %c0_i32_3 : i32
      scf.if %10 {
        %cst_20 = arith.constant 0.000000e+00 : f32
        %31 = vector.broadcast %cst_20 : f32 to vector<1x256xf32>
        %c0_21 = arith.constant 0 : index
        %c0_22 = arith.constant 0 : index
        %32 = vector.load %arg10[%c0_21, %c0_22] : memref<1x256xf32, #tpu.memory_space<vmem>>, vector<1x256xf32>
        tpu.vector_store %arg10[%c0_21, %c0_22], %31 {strides = array<i32>} : memref<1x256xf32, #tpu.memory_space<vmem>>, vector<1x256xf32>,
        %cst_23 = arith.constant 0.000000e+00 : f32
        %33 = vector.broadcast %cst_23 : f32 to vector<1x256xf32>
        %c0_24 = arith.constant 0 : index
        %c0_25 = arith.constant 0 : index
        %34 = vector.load %arg11[%c0_24, %c0_25] : memref<1x256xf32, #tpu.memory_space<vmem>>, vector<1x256xf32>
        tpu.vector_store %arg11[%c0_24, %c0_25], %33 {strides = array<i32>} : memref<1x256xf32, #tpu.memory_space<vmem>>, vector<1x256xf32>,
      } else {
      }
      %c0 = arith.constant 0 : index
      %c0_4 = arith.constant 0 : index
      %11 = vector.load %arg2[%c0, %c0_4] : memref<16x256xbf16, #tpu.memory_space<vmem>>, vector<16x256xbf16>
      %c0_5 = arith.constant 0 : index
      %c0_6 = arith.constant 0 : index
      %12 = vector.load %arg3[%c0_5, %c0_6] : memref<256x256xbf16, #tpu.memory_space<vmem>>, vector<256x256xbf16>
      %cst = arith.constant dense<0.000000e+00> : vector<16x256xf32>
      %13 = tpu.matmul %11, %12, %cst {dimension_numbers = #tpu.dot_dimension_numbers<[1], [0], [0], [1], [0, 0, 1, 1], [], []>} : vector<16x256xbf16>, vector<256x256xbf16>, vector<16x256xf32> -> vector<16x256xf32>
      %c0_7 = arith.constant 0 : index
      %c0_8 = arith.constant 0 : index
      %14 = vector.load %arg4[%c0_7, %c0_8] : memref<1x256xf32, #tpu.memory_space<vmem>>, vector<1x256xf32>
      %15 = vector.broadcast %14 : vector<1x256xf32> to vector<16x256xf32>
      %16 = arith.addf %13, %15 : vector<16x256xf32>
      %c0_9 = arith.constant 0 : index
      %c0_10 = arith.constant 0 : index
      %17 = vector.load %arg10[%c0_9, %c0_10] : memref<1x256xf32, #tpu.memory_space<vmem>>, vector<1x256xf32>
      %cst_11 = arith.constant dense<0.000000e+00> : vector<256xf32>
      %18 = vector.multi_reduction <add>, %16, %cst_11 [0] : vector<16x256xf32> to vector<256xf32>
      %19 = vector.shape_cast %18 : vector<256xf32> to vector<1x256xf32>
      %20 = arith.addf %17, %19 : vector<1x256xf32>
      %c0_12 = arith.constant 0 : index
      %c0_13 = arith.constant 0 : index
      %21 = vector.load %arg10[%c0_12, %c0_13] : memref<1x256xf32, #tpu.memory_space<vmem>>, vector<1x256xf32>
      tpu.vector_store %arg10[%c0_12, %c0_13], %20 {strides = array<i32>} : memref<1x256xf32, #tpu.memory_space<vmem>>, vector<1x256xf32>,
      %c0_14 = arith.constant 0 : index
      %c0_15 = arith.constant 0 : index
      %22 = vector.load %arg11[%c0_14, %c0_15] : memref<1x256xf32, #tpu.memory_space<vmem>>, vector<1x256xf32>
      %23 = arith.mulf %16, %16 : vector<16x256xf32>
      %cst_16 = arith.constant dense<0.000000e+00> : vector<256xf32>
      %24 = vector.multi_reduction <add>, %23, %cst_16 [0] : vector<16x256xf32> to vector<256xf32>
      %25 = vector.shape_cast %24 : vector<256xf32> to vector<1x256xf32>
      %26 = arith.addf %22, %25 : vector<1x256xf32>
      %c0_17 = arith.constant 0 : index
      %c0_18 = arith.constant 0 : index
      %27 = vector.load %arg11[%c0_17, %c0_18] : memref<1x256xf32, #tpu.memory_space<vmem>>, vector<1x256xf32>
      tpu.vector_store %arg11[%c0_17, %c0_18], %26 {strides = array<i32>} : memref<1x256xf32, #tpu.memory_space<vmem>>, vector<1x256xf32>,
      %28 = arith.truncf %16 : vector<16x256xf32> to vector<16x256xbf16>
      %29 = arith.index_cast %1 : i32 to index
      %c0_19 = arith.constant 0 : index
      %30 = vector.load %arg9[%29, %c0_19] : memref<48x256xbf16, #tpu.memory_space<vmem>>, vector<16x256xbf16>
      tpu.vector_store %arg9[%29, %c0_19], %28 {strides = array<i32>} : memref<48x256xbf16, #tpu.memory_space<vmem>>, vector<16x256xbf16>,
    } else {
    }
    %c1_i32 = arith.constant 1 : i32
    %5 = arith.cmpi eq, %arg0, %c1_i32 : i32
    %6 = arith.extui %5 : i1 to i32
    %c0_i32_1 = arith.constant 0 : i32
    %7 = arith.cmpi ne, %6, %c0_i32_1 : i32
    scf.if %7 {
      %c0_i32_2 = arith.constant 0 : i32
      %8 = arith.cmpi eq, %arg1, %c0_i32_2 : i32
      %9 = arith.extui %8 : i1 to i32
      %c0_i32_3 = arith.constant 0 : i32
      %10 = arith.cmpi ne, %9, %c0_i32_3 : i32
      scf.if %10 {
        %c0_15 = arith.constant 0 : index
        %c0_16 = arith.constant 0 : index
        %34 = vector.load %arg10[%c0_15, %c0_16] : memref<1x256xf32, #tpu.memory_space<vmem>>, vector<1x256xf32>
        %c0_17 = arith.constant 0 : index
        %c0_18 = arith.constant 0 : index
        %35 = vector.load %arg11[%c0_17, %c0_18] : memref<1x256xf32, #tpu.memory_space<vmem>>, vector<1x256xf32>
        %c0_19 = arith.constant 0 : index
        %c0_20 = arith.constant 0 : index
        %36 = vector.load %arg4[%c0_19, %c0_20] : memref<1x256xf32, #tpu.memory_space<vmem>>, vector<1x256xf32>
        %cst_21 = arith.constant 8.000000e+00 : f32
        %37 = vector.broadcast %cst_21 : f32 to vector<1x256xf32>
        %38 = arith.mulf %37, %36 : vector<1x256xf32>
        %39 = arith.subf %34, %38 : vector<1x256xf32>
        %40 = arith.mulf %36, %36 : vector<1x256xf32>
        %cst_22 = arith.constant 8.000000e+00 : f32
        %41 = vector.broadcast %cst_22 : f32 to vector<1x256xf32>
        %42 = arith.mulf %41, %40 : vector<1x256xf32>
        %43 = arith.subf %35, %42 : vector<1x256xf32>
        %cst_23 = arith.constant 2.500000e-02 : f32
        %44 = vector.broadcast %cst_23 : f32 to vector<1x256xf32>
        %45 = arith.mulf %39, %44 : vector<1x256xf32>
        %cst_24 = arith.constant 2.500000e-02 : f32
        %46 = vector.broadcast %cst_24 : f32 to vector<1x256xf32>
        %47 = arith.mulf %43, %46 : vector<1x256xf32>
        %48 = arith.mulf %45, %45 : vector<1x256xf32>
        %49 = arith.subf %47, %48 : vector<1x256xf32>
        %cst_25 = arith.constant 0.000000e+00 : f32
        %50 = vector.broadcast %cst_25 : f32 to vector<1x256xf32>
        %51 = arith.maximumf %49, %50 : vector<1x256xf32>
        %c0_26 = arith.constant 0 : index
        %c0_27 = arith.constant 0 : index
        %52 = vector.load %arg5[%c0_26, %c0_27] : memref<1x256xf32, #tpu.memory_space<vmem>>, vector<1x256xf32>
        %cst_28 = arith.constant 9.99999974E-6 : f32
        %53 = vector.broadcast %cst_28 : f32 to vector<1x256xf32>
        %54 = arith.addf %51, %53 : vector<1x256xf32>
        %55 = math.rsqrt %54 : vector<1x256xf32>
        %56 = arith.mulf %52, %55 : vector<1x256xf32>
        %c0_29 = arith.constant 0 : index
        %c0_30 = arith.constant 0 : index
        %57 = vector.load %arg10[%c0_29, %c0_30] : memref<1x256xf32, #tpu.memory_space<vmem>>, vector<1x256xf32>
        tpu.vector_store %arg10[%c0_29, %c0_30], %56 {strides = array<i32>} : memref<1x256xf32, #tpu.memory_space<vmem>>, vector<1x256xf32>,
        %c0_31 = arith.constant 0 : index
        %c0_32 = arith.constant 0 : index
        %58 = vector.load %arg6[%c0_31, %c0_32] : memref<1x256xf32, #tpu.memory_space<vmem>>, vector<1x256xf32>
        %59 = arith.mulf %45, %56 : vector<1x256xf32>
        %60 = arith.subf %58, %59 : vector<1x256xf32>
        %c0_33 = arith.constant 0 : index
        %c0_34 = arith.constant 0 : index
        %61 = vector.load %arg11[%c0_33, %c0_34] : memref<1x256xf32, #tpu.memory_space<vmem>>, vector<1x256xf32>
        tpu.vector_store %arg11[%c0_33, %c0_34], %60 {strides = array<i32>} : memref<1x256xf32, #tpu.memory_space<vmem>>, vector<1x256xf32>,
      } else {
      }
      %11 = arith.index_cast %1 : i32 to index
      %c0 = arith.constant 0 : index
      %12 = vector.load %arg9[%11, %c0] : memref<48x256xbf16, #tpu.memory_space<vmem>>, vector<16x256xbf16>
      %c0_4 = arith.constant 0 : index
      %c0_5 = arith.constant 0 : index
      %13 = vector.load %arg10[%c0_4, %c0_5] : memref<1x256xf32, #tpu.memory_space<vmem>>, vector<1x256xf32>
      %14 = arith.extf %12 : vector<16x256xbf16> to vector<16x256xf32>
      %15 = vector.broadcast %13 : vector<1x256xf32> to vector<16x256xf32>
      %16 = arith.mulf %14, %15 : vector<16x256xf32>
      %c0_6 = arith.constant 0 : index
      %c0_7 = arith.constant 0 : index
      %17 = vector.load %arg11[%c0_6, %c0_7] : memref<1x256xf32, #tpu.memory_space<vmem>>, vector<1x256xf32>
      %18 = vector.broadcast %17 : vector<1x256xf32> to vector<16x256xf32>
      %19 = arith.addf %16, %18 : vector<16x256xf32>
      %cst = arith.constant 0.000000e+00 : f32
      %20 = vector.broadcast %cst : f32 to vector<16x256xf32>
      %21 = arith.maximumf %19, %20 : vector<16x256xf32>
      %22 = arith.truncf %21 : vector<16x256xf32> to vector<16x256xbf16>
      %c0_8 = arith.constant 0 : index
      %c0_9 = arith.constant 0 : index
      %23 = vector.load %arg7[%c0_8, %c0_9] : memref<256x128xbf16, #tpu.memory_space<vmem>>, vector<256x128xbf16>
      %cst_10 = arith.constant dense<0.000000e+00> : vector<16x128xf32>
      %24 = tpu.matmul %22, %23, %cst_10 {dimension_numbers = #tpu.dot_dimension_numbers<[1], [0], [0], [1], [0, 0, 1, 1], [], []>} : vector<16x256xbf16>, vector<256x128xbf16>, vector<16x128xf32> -> vector<16x128xf32>
      %25 = arith.mulf %24, %24 : vector<16x128xf32>
      %cst_11 = arith.constant dense<0.000000e+00> : vector<16xf32>
      %26 = vector.multi_reduction <add>, %25, %cst_11 [1] : vector<16x128xf32> to vector<16xf32>
      %27 = vector.shape_cast %26 : vector<16xf32> to vector<16x1xf32>
      %cst_12 = arith.constant 1.000000e-24 : f32
      %28 = vector.broadcast %cst_12 : f32 to vector<16x1xf32>
      %29 = arith.maximumf %27, %28 : vector<16x1xf32>
      %30 = math.rsqrt %29 : vector<16x1xf32>
      %31 = vector.broadcast %30 : vector<16x1xf32> to vector<16x128xf32>
      %32 = arith.mulf %24, %31 : vector<16x128xf32>
      %c0_13 = arith.constant 0 : index
      %c0_14 = arith.constant 0 : index
      %33 = vector.load %arg8[%c0_13, %c0_14] : memref<16x128xf32, #tpu.memory_space<vmem>>, vector<16x128xf32>
      tpu.vector_store %arg8[%c0_13, %c0_14], %32 {strides = array<i32>} : memref<16x128xf32, #tpu.memory_space<vmem>>, vector<16x128xf32>,
    } else {
    }
    return
  }
  func.func @transform_0(%arg0: i32, %arg1: i32) -> (i32, i32) {
    %c1_i32 = arith.constant 1 : i32
    %0 = arith.subi %c1_i32, %arg0 : i32
    %1 = arith.muli %0, %arg1 : i32
    %c0_i32 = arith.constant 0 : i32
    %c0_i32_0 = arith.constant 0 : i32
    return %1, %c0_i32 : i32, i32
  }
  func.func @transform_1(%arg0: i32, %arg1: i32) -> (i32, i32) {
    %c0_i32 = arith.constant 0 : i32
    %c0_i32_0 = arith.constant 0 : i32
    %c0_i32_1 = arith.constant 0 : i32
    return %c0_i32, %c0_i32_0 : i32, i32
  }
  func.func @transform_2(%arg0: i32, %arg1: i32) -> (i32, i32) {
    %c0_i32 = arith.constant 0 : i32
    %c0_i32_0 = arith.constant 0 : i32
    %c0_i32_1 = arith.constant 0 : i32
    return %c0_i32, %c0_i32_0 : i32, i32
  }
  func.func @transform_3(%arg0: i32, %arg1: i32) -> (i32, i32) {
    %c0_i32 = arith.constant 0 : i32
    %c0_i32_0 = arith.constant 0 : i32
    %c0_i32_1 = arith.constant 0 : i32
    return %c0_i32, %c0_i32_0 : i32, i32
  }
  func.func @transform_4(%arg0: i32, %arg1: i32) -> (i32, i32) {
    %c0_i32 = arith.constant 0 : i32
    %c0_i32_0 = arith.constant 0 : i32
    %c0_i32_1 = arith.constant 0 : i32
    return %c0_i32, %c0_i32_0 : i32, i32
  }
  func.func @transform_5(%arg0: i32, %arg1: i32) -> (i32, i32) {
    %c0_i32 = arith.constant 0 : i32
    %c0_i32_0 = arith.constant 0 : i32
    %c0_i32_1 = arith.constant 0 : i32
    return %c0_i32, %c0_i32_0 : i32, i32
  }
  func.func @transform_6(%arg0: i32, %arg1: i32) -> (i32, i32) {
    %0 = arith.muli %arg0, %arg1 : i32
    %c0_i32 = arith.constant 0 : i32
    %c0_i32_0 = arith.constant 0 : i32
    return %0, %c0_i32 : i32, i32
  }
}

</mosaic_0001>

<llo_original>
// kernel: tpu_custom_call.1
$region0: #{tpu_custom_call.1}
  #allocation0 [shape = 'u32[]', space=smem, size = 0x4, offset = 0x4, fixed_abs, tag = 'smem constant byte address 0x4 - core index']
  #allocation1 [shape = 'u32[144,128]{1,0:T(1,128)}', space=vmem, size = 0x12000, scoped, tag = 'internal scratch']
  #allocation2 [shape = 'bf16[48,256]{1,0:T(16,128)(2,1)}', space=vmem, size = 0x6000, scoped, tag = 'scratch operand']
  #allocation3 [shape = 'f32[1,256]{1,0:T(1,128)}', space=vmem, size = 0x400, scoped, tag = 'scratch operand']
  #allocation4 [shape = 'f32[1,256]{1,0:T(1,128)}', space=vmem, size = 0x400, scoped, tag = 'scratch operand']
  %s0 = inlined_call_operand.hbm [shape: bf16[48,256], index: 0, kind: input, shape index: {}]
  %s1 = inlined_call_operand.hbm [shape: bf16[256,256], index: 1, kind: input, shape index: {}]
  %s2 = inlined_call_operand.vmem [shape: f32[1,256], index: 2, kind: input, shape index: {}]
  %s3 = inlined_call_operand.vmem [shape: f32[1,256], index: 3, kind: input, shape index: {}]
  %s4 = inlined_call_operand.vmem [shape: f32[1,256], index: 4, kind: input, shape index: {}]
  %s5 = inlined_call_operand.hbm [shape: bf16[256,128], index: 5, kind: input, shape index: {}]
  %s6 = inlined_call_operand.hbm [shape: f32[48,128], index: 6, kind: output, shape index: {}]
  %s7 = sld [smem:[#allocation0]]
  $region85: #{tpu_custom_call.1} parent=0
    _
  %s9 = ssub.s32 1, %s7
  %s10 = scalar_select 0, %s9, %s7
  $region1: #{tpu_custom_call.1} parent=0
    #allocation5 [shape = 'u8[16384]{0}', space=vmem, size = 0x4000, scoped, tag = 'input window, operand 0']
    #allocation6 [shape = 's32[2]{0}', space=sflag, size = 0x8, scoped, tag = 'scoped memory for tpu_custom_call.1']
    #allocation7 [shape = 's32[2]{0}', space=sflag, size = 0x8, scoped, tag = 'scoped memory for tpu_custom_call.1']
    #allocation8 [shape = 'u8[131072]{0}', space=vmem, size = 0x20000, scoped, tag = 'input window, operand 1, single buffered']
    #allocation9 [shape = 's32[1]{0}', space=sflag, size = 0x4, scoped, tag = 'scoped memory for tpu_custom_call.1']
    #allocation10 [shape = 'u8[65536]{0}', space=vmem, size = 0x10000, scoped, tag = 'input window, operand 5, single buffered']
    #allocation11 [shape = 'u8[16384]{0}', space=vmem, size = 0x4000, scoped, tag = 'output window, operand 0']
    %11 = vsyncpa [#allocation6], 0
    %s12 = scalar_lea.sflag [#allocation6], 1
    %13 = vsyncpa %s12, 0
    %14 = vsyncpa [#allocation9], 0
    %15 = vsyncpa [#allocation7], 0
    %s16 = scalar_lea.sflag [#allocation7], 1
    %17 = vsyncpa %s16, 0
    loop: start=0, step=1, limit=8
    $region2: #{tpu_custom_call.1} parent=1 // loop_pre_header
      _
    $region3: #{tpu_custom_call.1} parent=1 // loop_header
      %s19 = sphi 0, %s23
      %p20 = scmp.ge.s32.totalorder %s19, 8
      %s26 = sphi 0, %s38
      %s27 = sphi 0, %s34
      %s28 = sphi 0, %s26
      %s29 = sphi 0, %s27
      %s30 = sphi 0, %s28
      %s31 = sphi 0, %s29
      %s45 = sphi 0, %s47
      %s48 = sphi 0, %s45
      %s49 = sphi 0, %s48
      %s65 = sphi 0, %s49
      %s69 = sphi 0, %s69
      %s71 = sphi 0, %s69
      %s72 = sphi 0, %s71
      %s86 = sphi 0, %s72
      %s90 = sphi 0, %s90
      %s92 = sphi 0, %s90
      %s93 = sphi 0, %s92
      %s107 = sphi 0, %s93
      %s111 = sphi 0, %s111
      %s113 = sphi 0, %s111
      %s114 = sphi 0, %s113
      %s128 = sphi 0, %s114
      %s132 = sphi 0, %s132
      %s134 = sphi 0, %s132
      %s135 = sphi 0, %s134
      %s149 = sphi 0, %s135
      %s153 = sphi 0, %s153
      %s155 = sphi 0, %s153
      %s156 = sphi 0, %s155
      %s170 = sphi 0, %s156
      %s178 = sphi 0, %s180
      %s181 = sphi 0, %s178
      %s182 = sphi 0, %s181
      %s198 = sphi 0, %s182
    $region4: #{tpu_custom_call.1} parent=1 // loop_header_branch
      %22 = sbr.rel (%p20) target = $region8
    $region5: #{tpu_custom_call.1} parent=1 // loop_body
      %s24 = ssub.s32 %s19, 1
      %s25 = ssub.s32 %s19, 2
      %s32 = sadd.s32 1, %s27
      %p33 = scmp.ge.s32.totalorder %s32, 3
      %s34 = scalar_select %p33, 0, %s32
      %s35 = sadd.s32 1, %s26
      %s36 = scalar_select %p33, %s35, %s26
      %p37 = scmp.ge.s32.totalorder %s36, 2
      %s38 = scalar_select %p37, 0, %s36
      %s39 = ssub.s32 1, %s26
      %s40 = smul.u32 %s39, %s27
      %s41 = ssub.s32 1, %s38
      %s42 = smul.u32 %s41, %s34
      %s43 = ssub.s32 %s40, %s42
      %p44 = scmp.eq.s32.totalorder %s43, 0
      %s46 = sadd.s32 %s45, 1
      %s47 = scalar_select %p44, %s45, %s46
      %p50 = pneg %p44
      %p51 = scmp.eq.s32.totalorder %s19, 5
      %p52 = por %p50, %p51
      %p53 = scmp.ne.s32.totalorder %s45, %s48
      %p54 = scmp.eq.s32.totalorder %s19, 0
      %p55 = por %p53, %p54
      %p56 = scmp.ne.s32.totalorder %s45, %s48
      %p57 = scmp.eq.s32.totalorder %s24, 5
      %p58 = por %p56, %p57
      %p59 = scmp.ne.s32.totalorder %s48, %s49
      %p60 = scmp.eq.s32.totalorder %s24, 0
      %p61 = por %p59, %p60
      %p62 = scmp.ne.s32.totalorder %s48, %s49
      %p63 = scmp.eq.s32.totalorder %s25, 5
      %p64 = por %p62, %p63
      %p66 = scmp.ne.s32.totalorder %s49, %s65
      %p67 = scmp.eq.s32.totalorder %s25, 0
      %p68 = por %p66, %p67
      %s70 = sadd.s32 %s69, 1
      %p73 = scmp.eq.s32.totalorder %s19, 5
      %p74 = scmp.ne.s32.totalorder %s69, %s71
      %p75 = scmp.eq.s32.totalorder %s19, 0
      %p76 = por %p74, %p75
      %p77 = scmp.ne.s32.totalorder %s69, %s71
      %p78 = scmp.eq.s32.totalorder %s24, 5
      %p79 = por %p77, %p78
      %p80 = scmp.ne.s32.totalorder %s71, %s72
      %p81 = scmp.eq.s32.totalorder %s24, 0
      %p82 = por %p80, %p81
      %p83 = scmp.ne.s32.totalorder %s71, %s72
      %p84 = scmp.eq.s32.totalorder %s25, 5
      %p85 = por %p83, %p84
      %p87 = scmp.ne.s32.totalorder %s72, %s86
      %p88 = scmp.eq.s32.totalorder %s25, 0
      %p89 = por %p87, %p88
      %s91 = sadd.s32 %s90, 1
      %p94 = scmp.eq.s32.totalorder %s19, 5
      %p95 = scmp.ne.s32.totalorder %s90, %s92
      %p96 = scmp.eq.s32.totalorder %s19, 0
      %p97 = por %p95, %p96
      %p98 = scmp.ne.s32.totalorder %s90, %s92
      %p99 = scmp.eq.s32.totalorder %s24, 5
      %p100 = por %p98, %p99
      %p101 = scmp.ne.s32.totalorder %s92, %s93
      %p102 = scmp.eq.s32.totalorder %s24, 0
      %p103 = por %p101, %p102
      %p104 = scmp.ne.s32.totalorder %s92, %s93
      %p105 = scmp.eq.s32.totalorder %s25, 5
      %p106 = por %p104, %p105
      %p108 = scmp.ne.s32.totalorder %s93, %s107
      %p109 = scmp.eq.s32.totalorder %s25, 0
      %p110 = por %p108, %p109
      %s112 = sadd.s32 %s111, 1
      %p115 = scmp.eq.s32.totalorder %s19, 5
      %p116 = scmp.ne.s32.totalorder %s111, %s113
      %p117 = scmp.eq.s32.totalorder %s19, 0
      %p118 = por %p116, %p117
      %p119 = scmp.ne.s32.totalorder %s111, %s113
      %p120 = scmp.eq.s32.totalorder %s24, 5
      %p121 = por %p119, %p120
      %p122 = scmp.ne.s32.totalorder %s113, %s114
      %p123 = scmp.eq.s32.totalorder %s24, 0
      %p124 = por %p122, %p123
      %p125 = scmp.ne.s32.totalorder %s113, %s114
      %p126 = scmp.eq.s32.totalorder %s25, 5
      %p127 = por %p125, %p126
      %p129 = scmp.ne.s32.totalorder %s114, %s128
      %p130 = scmp.eq.s32.totalorder %s25, 0
      %p131 = por %p129, %p130
      %s133 = sadd.s32 %s132, 1
      %p136 = scmp.eq.s32.totalorder %s19, 5
      %p137 = scmp.ne.s32.totalorder %s132, %s134
      %p138 = scmp.eq.s32.totalorder %s19, 0
      %p139 = por %p137, %p138
      %p140 = scmp.ne.s32.totalorder %s132, %s134
      %p141 = scmp.eq.s32.totalorder %s24, 5
      %p142 = por %p140, %p141
      %p143 = scmp.ne.s32.totalorder %s134, %s135
      %p144 = scmp.eq.s32.totalorder %s24, 0
      %p145 = por %p143, %p144
      %p146 = scmp.ne.s32.totalorder %s134, %s135
      %p147 = scmp.eq.s32.totalorder %s25, 5
      %p148 = por %p146, %p147
      %p150 = scmp.ne.s32.totalorder %s135, %s149
      %p151 = scmp.eq.s32.totalorder %s25, 0
      %p152 = por %p150, %p151
      %s154 = sadd.s32 %s153, 1
      %p157 = scmp.eq.s32.totalorder %s19, 5
      %p158 = scmp.ne.s32.totalorder %s153, %s155
      %p159 = scmp.eq.s32.totalorder %s19, 0
      %p160 = por %p158, %p159
      %p161 = scmp.ne.s32.totalorder %s153, %s155
      %p162 = scmp.eq.s32.totalorder %s24, 5
      %p163 = por %p161, %p162
      %p164 = scmp.ne.s32.totalorder %s155, %s156
      %p165 = scmp.eq.s32.totalorder %s24, 0
      %p166 = por %p164, %p165
      %p167 = scmp.ne.s32.totalorder %s155, %s156
      %p168 = scmp.eq.s32.totalorder %s25, 5
      %p169 = por %p167, %p168
      %p171 = scmp.ne.s32.totalorder %s156, %s170
      %p172 = scmp.eq.s32.totalorder %s25, 0
      %p173 = por %p171, %p172
      %s174 = smul.u32 %s26, %s27
      %s175 = smul.u32 %s38, %s34
      %s176 = ssub.s32 %s174, %s175
      %p177 = scmp.eq.s32.totalorder %s176, 0
      %s179 = sadd.s32 %s178, 1
      %s180 = scalar_select %p177, %s178, %s179
      %p183 = pneg %p177
      %p184 = scmp.eq.s32.totalorder %s19, 5
      %p185 = por %p183, %p184
      %p186 = scmp.ne.s32.totalorder %s178, %s181
      %p187 = scmp.eq.s32.totalorder %s19, 0
      %p188 = por %p186, %p187
      %p189 = scmp.ne.s32.totalorder %s178, %s181
      %p190 = scmp.eq.s32.totalorder %s24, 5
      %p191 = por %p189, %p190
      %p192 = scmp.ne.s32.totalorder %s181, %s182
      %p193 = scmp.eq.s32.totalorder %s24, 0
      %p194 = por %p192, %p193
      %p195 = scmp.ne.s32.totalorder %s181, %s182
      %p196 = scmp.eq.s32.totalorder %s25, 5
      %p197 = por %p195, %p196
      %p199 = scmp.ne.s32.totalorder %s182, %s198
      %p200 = scmp.eq.s32.totalorder %s25, 0
      %p201 = por %p199, %p200
      %p202 = scmp.le.s32.totalorder 1, %s19
      %p203 = scmp.lt.s32.totalorder %s19, 7
      %p204 = pnand %p202, %p203
      %p205 = pneg %p204
      // Predicated region
      $region9: #{tpu_custom_call.1} parent=5 // pred_check
        _
      $region10: #{tpu_custom_call.1} parent=5 // pred_check_branch
        %207 = sbr.rel (%p204) target = $region12
      $region11: #{tpu_custom_call.1} parent=5 // pred_region
        %s208 = ssub.s32 %s19, 1
        // Predicated region
        $region13: #{tpu_custom_call.1} parent=11 // pred_check
          %p209 = pneg %p82
        $region14: #{tpu_custom_call.1} parent=11 // pred_check_branch
          %211 = sbr.rel (%p209) target = $region16
        $region15: #{tpu_custom_call.1} parent=11 // pred_region
          %s213 = ssub.s32 4096, 4096
          %214 = vsyncadd [#allocation9], %s213
          %s215 = sshll.u32 [#allocation8], 4
          %s216 = int_to_ptr.vmem [resolvable:$true] %s215
          %221 = dma.hbm_to_vmem [thread:$0]  %s1, 4096, %s216, [#allocation9], 128, 128, 8
        $region16: #{tpu_custom_call.1} parent=11 // pred_fallthru
          _
        // Predicated region
        $region17: #{tpu_custom_call.1} parent=11 // pred_check
          %p222 = pneg %p103
        $region18: #{tpu_custom_call.1} parent=11 // pred_check_branch
          %224 = sbr.rel (%p222) target = $region20
        $region19: #{tpu_custom_call.1} parent=11 // pred_region
          _
        $region20: #{tpu_custom_call.1} parent=11 // pred_fallthru
          _
        // Predicated region
        $region21: #{tpu_custom_call.1} parent=11 // pred_check
          %p225 = pneg %p124
        $region22: #{tpu_custom_call.1} parent=11 // pred_check_branch
          %227 = sbr.rel (%p225) target = $region24
        $region23: #{tpu_custom_call.1} parent=11 // pred_region
          _
        $region24: #{tpu_custom_call.1} parent=11 // pred_fallthru
          _
        // Predicated region
        $region25: #{tpu_custom_call.1} parent=11 // pred_check
          %p228 = pneg %p145
        $region26: #{tpu_custom_call.1} parent=11 // pred_check_branch
          %230 = sbr.rel (%p228) target = $region28
        $region27: #{tpu_custom_call.1} parent=11 // pred_region
          _
        $region28: #{tpu_custom_call.1} parent=11 // pred_fallthru
          _
        // Predicated region
        $region29: #{tpu_custom_call.1} parent=11 // pred_check
          %p231 = pneg %p166
        $region30: #{tpu_custom_call.1} parent=11 // pred_check_branch
          %233 = sbr.rel (%p231) target = $region32
        $region31: #{tpu_custom_call.1} parent=11 // pred_region
          %s235 = ssub.s32 2048, 2048
          %236 = vsyncadd [#allocation9], %s235
          %s237 = sshll.u32 [#allocation10], 4
          %s238 = int_to_ptr.vmem [resolvable:$true] %s237
          %243 = dma.hbm_to_vmem [thread:$0]  %s5, 2048, %s238, [#allocation9], 64, 64, 4
        $region32: #{tpu_custom_call.1} parent=11 // pred_fallthru
          _
      $region12: #{tpu_custom_call.1} parent=5 // pred_fallthru
        _
      %p244 = scmp.lt.s32.totalorder %s19, 6
      // Predicated region
      $region33: #{tpu_custom_call.1} parent=5 // pred_check
        %p245 = pneg %p244
      $region34: #{tpu_custom_call.1} parent=5 // pred_check_branch
        %247 = sbr.rel (%p245) target = $region36
      $region35: #{tpu_custom_call.1} parent=5 // pred_region
        // Predicated region
        $region37: #{tpu_custom_call.1} parent=35 // pred_check
          %p248 = pneg %p55
        $region38: #{tpu_custom_call.1} parent=35 // pred_check_branch
          %250 = sbr.rel (%p248) target = $region40
        $region39: #{tpu_custom_call.1} parent=35 // pred_region
          %s251 = sand.u32 %s45, 1
          %s252 = scalar_lea.sflag [#allocation6], %s251
          %s253 = sand.u32 %s45, 1
          %s254 = smul.addr %s253, 16
          %s255 = scalar_lea.vmem [#allocation5], %s254
          %s256 = ssub.s32 1, %s26
          %s257 = smul.u32 %s256, %s27
          %s258 = smul.u32 2, %s257
          %s260 = ssub.s32 256, 256
          %261 = vsyncadd %s252, %s260
          %s262 = smul.addr %s258, 2
          %s263 = smul.addr %s262, 64
          %s264 = scalar_lea.hbm %s0, %s263
          %s265 = sshll.u32 %s255, 4
          %s266 = int_to_ptr.vmem [resolvable:$true] %s265
          %271 = dma.hbm_to_vmem [thread:$0]  %s264, 256, %s266, %s252, 128, 128, 8
        $region40: #{tpu_custom_call.1} parent=35 // pred_fallthru
          _
      $region36: #{tpu_custom_call.1} parent=5 // pred_fallthru
        _
      %p272 = scmp.le.s32.totalorder 1, %s19
      %p273 = scmp.lt.s32.totalorder %s19, 7
      %p274 = pnand %p272, %p273
      %p275 = pneg %p274
      // Predicated region
      $region41: #{tpu_custom_call.1} parent=5 // pred_check
        _
      $region42: #{tpu_custom_call.1} parent=5 // pred_check_branch
        %277 = sbr.rel (%p274) target = $region44
      $region43: #{tpu_custom_call.1} parent=5 // pred_region
        %s278 = ssub.s32 %s19, 1
        %s279 = sand.u32 %s48, 1
        %s280 = scalar_lea.sflag [#allocation6], %s279
        %s281 = sand.u32 %s48, 1
        %s282 = smul.addr %s281, 16
        %s283 = scalar_lea.vmem [#allocation5], %s282
        // Predicated region
        $region45: #{tpu_custom_call.1} parent=43 // pred_check
          %p284 = pneg %p61
        $region46: #{tpu_custom_call.1} parent=43 // pred_check_branch
          %286 = sbr.rel (%p284) target = $region48
        $region47: #{tpu_custom_call.1} parent=43 // pred_region
          %287 = dma.done %s280, 256
        $region48: #{tpu_custom_call.1} parent=43 // pred_fallthru
          _
        // Predicated region
        $region49: #{tpu_custom_call.1} parent=43 // pred_check
          %p288 = pneg %p82
        $region50: #{tpu_custom_call.1} parent=43 // pred_check_branch
          %290 = sbr.rel (%p288) target = $region52
        $region51: #{tpu_custom_call.1} parent=43 // pred_region
          %291 = dma.done [#allocation9], 4096
        $region52: #{tpu_custom_call.1} parent=43 // pred_fallthru
          _
        // Predicated region
        $region53: #{tpu_custom_call.1} parent=43 // pred_check
          %p292 = pneg %p166
        $region54: #{tpu_custom_call.1} parent=43 // pred_check_branch
          %294 = sbr.rel (%p292) target = $region56
        $region55: #{tpu_custom_call.1} parent=43 // pred_region
          %295 = dma.done [#allocation9], 2048
        $region56: #{tpu_custom_call.1} parent=43 // pred_fallthru
          _
        %s296 = sand.u32 %s48, 1
        %s297 = scalar_lea.sflag [#allocation6], %s296
        %s298 = sand.u32 %s48, 1
        %s299 = smul.addr %s298, 16
        %s300 = scalar_lea.vmem [#allocation5], %s299
        %p301 = pneg %p61
        %p302 = pneg %p58
        %p303 = pneg %p82
        %p304 = pneg %p79
        %p305 = pneg %p103
        %p306 = pneg %p100
        %p307 = pneg %p124
        %p308 = pneg %p121
        %p309 = pneg %p145
        %p310 = pneg %p142
        %p311 = pneg %p166
        %p312 = pneg %p163
        %p313 = pneg %p194
        %p314 = pneg %p191
        %s315 = sand.u32 %s181, 1
        %s316 = scalar_lea.sflag [#allocation7], %s315
        %s317 = sand.u32 %s181, 1
        %s318 = smul.addr %s317, 16
        %s319 = scalar_lea.vmem [#allocation11], %s318
        %s320 = ssub.s32 1, %s28
        %s321 = smul.u32 %s320, %s29
        %s322 = smul.u32 2, %s321
        %s323 = smul.u32 %s28, %s29
        %s324 = smul.u32 2, %s323
        %s326 = smul.u32 %s29, 16
        %p327 = scmp.eq.s32.totalorder %s28, 0
        // Predicated region
        $region57: #{tpu_custom_call.1} parent=43 // pred_check
          %p328 = pneg %p327
        $region58: #{tpu_custom_call.1} parent=43 // pred_check_branch
          %330 = sbr.rel (%p328) target = $region60
        $region59: #{tpu_custom_call.1} parent=43 // pred_region
          %p331 = scmp.eq.s32.totalorder %s29, 0
          // Predicated region
          $region61: #{tpu_custom_call.1} parent=59 // pred_check
            %p332 = pneg %p331
          $region62: #{tpu_custom_call.1} parent=59 // pred_check_branch
            %334 = sbr.rel (%p332) target = $region64
          $region63: #{tpu_custom_call.1} parent=59 // pred_region
            %v335 = vlaneseq
            %vm336 = vcmp.ge.s32.totalorder %v335, 0
            %vm337 = vcmp.lt.s32.totalorder %v335, 256
            %vm338 = vmand %vm336, %vm337
            %339 = vst.msk [vmem:[#allocation3] sm:$0x3] %vm338, 0.0
            %340 = vst.msk [vmem:[#allocation4] sm:$0x3] %vm338, 0.0
          $region64: #{tpu_custom_call.1} parent=59 // pred_fallthru
            _
          %v341 = vld [vmem:[%s283] sm:$0xff]
          %v342 = vld [vmem:[%s283 + $0x8] sm:$0xff]
          %v343 = vld [vmem:[#allocation8] sm:$0xff]
          %v344 = vld [vmem:[#allocation8 + $0x8] sm:$0xff]
          %v345 = vld [vmem:[#allocation8 + $0x10] sm:$0xff]
          %v346 = vld [vmem:[#allocation8 + $0x18] sm:$0xff]
          %v347 = vld [vmem:[#allocation8 + $0x20] sm:$0xff]
          %v348 = vld [vmem:[#allocation8 + $0x28] sm:$0xff]
          %v349 = vld [vmem:[#allocation8 + $0x30] sm:$0xff]
          %v350 = vld [vmem:[#allocation8 + $0x38] sm:$0xff]
          %v351 = vld [vmem:[#allocation8 + $0x40] sm:$0xff]
          %v352 = vld [vmem:[#allocation8 + $0x48] sm:$0xff]
          %v353 = vld [vmem:[#allocation8 + $0x50] sm:$0xff]
          %v354 = vld [vmem:[#allocation8 + $0x58] sm:$0xff]
          %v355 = vld [vmem:[#allocation8 + $0x60] sm:$0xff]
          %v356 = vld [vmem:[#allocation8 + $0x68] sm:$0xff]
          %v357 = vld [vmem:[#allocation8 + $0x70] sm:$0xff]
          %v358 = vld [vmem:[#allocation8 + $0x78] sm:$0xff]
          %v359 = vld [vmem:[#allocation8 + $0x80] sm:$0xff]
          %v360 = vld [vmem:[#allocation8 + $0x88] sm:$0xff]
          %v361 = vld [vmem:[#allocation8 + $0x90] sm:$0xff]
          %v362 = vld [vmem:[#allocation8 + $0x98] sm:$0xff]
          %v363 = vld [vmem:[#allocation8 + $0xa0] sm:$0xff]
          %v364 = vld [vmem:[#allocation8 + $0xa8] sm:$0xff]
          %v365 = vld [vmem:[#allocation8 + $0xb0] sm:$0xff]
          %v366 = vld [vmem:[#allocation8 + $0xb8] sm:$0xff]
          %v367 = vld [vmem:[#allocation8 + $0xc0] sm:$0xff]
          %v368 = vld [vmem:[#allocation8 + $0xc8] sm:$0xff]
          %v369 = vld [vmem:[#allocation8 + $0xd0] sm:$0xff]
          %v370 = vld [vmem:[#allocation8 + $0xd8] sm:$0xff]
          %v371 = vld [vmem:[#allocation8 + $0xe0] sm:$0xff]
          %v372 = vld [vmem:[#allocation8 + $0xe8] sm:$0xff]
          %v373 = vld [vmem:[#allocation8 + $0xf0] sm:$0xff]
          %v374 = vld [vmem:[#allocation8 + $0xf8] sm:$0xff]
          %v375 = vld [vmem:[%s2] sm:$0x3]
          %v377 = vlaneseq
          %v378 = vshrl.u32 %v377, 7
          %v379 = vsub.s32 0, %v378
          %v380 = vrot.slane %v375, %v379
          %v381 = vlaneseq
          %v382 = vshrl.u32 %v381, 7
          %v383 = vsub.s32 1, %v382
          %v384 = vrot.slane %v375, %v383
          %v389 = vunpack.c.l.b16 %v341
          %v390 = vunpack.c.h.b16 %v341
          %v391 = vunpack.c.l.b16 %v342
          %v392 = vunpack.c.h.b16 %v342
          %v393 = vpack.c.b16 %v391, %v389
          %v394 = vpack.c.b16 %v392, %v390
          %v429 = vunpack.c.l.b16 %v343
          %v430 = vunpack.c.h.b16 %v343
          %v431 = vunpack.c.l.b16 %v344
          %v432 = vunpack.c.h.b16 %v344
          %v433 = vunpack.c.l.b16 %v345
          %v434 = vunpack.c.h.b16 %v345
          %v435 = vunpack.c.l.b16 %v346
          %v436 = vunpack.c.h.b16 %v346
          %v437 = vunpack.c.l.b16 %v347
          %v438 = vunpack.c.h.b16 %v347
          %v439 = vunpack.c.l.b16 %v348
          %v440 = vunpack.c.h.b16 %v348
          %v441 = vunpack.c.l.b16 %v349
          %v442 = vunpack.c.h.b16 %v349
          %v443 = vunpack.c.l.b16 %v350
          %v444 = vunpack.c.h.b16 %v350
          %v445 = vunpack.c.l.b16 %v351
          %v446 = vunpack.c.h.b16 %v351
          %v447 = vunpack.c.l.b16 %v352
          %v448 = vunpack.c.h.b16 %v352
          %v449 = vunpack.c.l.b16 %v353
          %v450 = vunpack.c.h.b16 %v353
          %v451 = vunpack.c.l.b16 %v354
          %v452 = vunpack.c.h.b16 %v354
          %v453 = vunpack.c.l.b16 %v355
          %v454 = vunpack.c.h.b16 %v355
          %v455 = vunpack.c.l.b16 %v356
          %v456 = vunpack.c.h.b16 %v356
          %v457 = vunpack.c.l.b16 %v357
          %v458 = vunpack.c.h.b16 %v357
          %v459 = vunpack.c.l.b16 %v358
          %v460 = vunpack.c.h.b16 %v358
          %v461 = vunpack.c.l.b16 %v359
          %v462 = vunpack.c.h.b16 %v359
          %v463 = vunpack.c.l.b16 %v360
          %v464 = vunpack.c.h.b16 %v360
          %v465 = vunpack.c.l.b16 %v361
          %v466 = vunpack.c.h.b16 %v361
          %v467 = vunpack.c.l.b16 %v362
          %v468 = vunpack.c.h.b16 %v362
          %v469 = vunpack.c.l.b16 %v363
          %v470 = vunpack.c.h.b16 %v363
          %v471 = vunpack.c.l.b16 %v364
          %v472 = vunpack.c.h.b16 %v364
          %v473 = vunpack.c.l.b16 %v365
          %v474 = vunpack.c.h.b16 %v365
          %v475 = vunpack.c.l.b16 %v366
          %v476 = vunpack.c.h.b16 %v366
          %v477 = vunpack.c.l.b16 %v367
          %v478 = vunpack.c.h.b16 %v367
          %v479 = vunpack.c.l.b16 %v368
          %v480 = vunpack.c.h.b16 %v368
          %v481 = vunpack.c.l.b16 %v369
          %v482 = vunpack.c.h.b16 %v369
          %v483 = vunpack.c.l.b16 %v370
          %v484 = vunpack.c.h.b16 %v370
          %v485 = vunpack.c.l.b16 %v371
          %v486 = vunpack.c.h.b16 %v371
          %v487 = vunpack.c.l.b16 %v372
          %v488 = vunpack.c.h.b16 %v372
          %v489 = vunpack.c.l.b16 %v373
          %v490 = vunpack.c.h.b16 %v373
          %v491 = vunpack.c.l.b16 %v374
          %v492 = vunpack.c.h.b16 %v374
          %v493 = vpack.c.b16 %v431, %v429
          %v494 = vpack.c.b16 %v432, %v430
          %v495 = vpack.c.b16 %v435, %v433
          %v496 = vpack.c.b16 %v436, %v434
          %v497 = vpack.c.b16 %v439, %v437
          %v498 = vpack.c.b16 %v440, %v438
          %v499 = vpack.c.b16 %v443, %v441
          %v500 = vpack.c.b16 %v444, %v442
          %v501 = vpack.c.b16 %v447, %v445
          %v502 = vpack.c.b16 %v448, %v446
          %v503 = vpack.c.b16 %v451, %v449
          %v504 = vpack.c.b16 %v452, %v450
          %v505 = vpack.c.b16 %v455, %v453
          %v506 = vpack.c.b16 %v456, %v454
          %v507 = vpack.c.b16 %v459, %v457
          %v508 = vpack.c.b16 %v460, %v458
          %v509 = vpack.c.b16 %v463, %v461
          %v510 = vpack.c.b16 %v464, %v462
          %v511 = vpack.c.b16 %v467, %v465
          %v512 = vpack.c.b16 %v468, %v466
          %v513 = vpack.c.b16 %v471, %v469
          %v514 = vpack.c.b16 %v472, %v470
          %v515 = vpack.c.b16 %v475, %v473
          %v516 = vpack.c.b16 %v476, %v474
          %v517 = vpack.c.b16 %v479, %v477
          %v518 = vpack.c.b16 %v480, %v478
          %v519 = vpack.c.b16 %v483, %v481
          %v520 = vpack.c.b16 %v484, %v482
          %v521 = vpack.c.b16 %v487, %v485
          %v522 = vpack.c.b16 %v488, %v486
          %v523 = vpack.c.b16 %v491, %v489
          %v524 = vpack.c.b16 %v492, %v490
          %557 = vmatprep.subr.bf16.mxu0 %v494
          %558 = vmatpush1.bf16.msra.mxu0 %v493
          %559 = vmatprep.subr.bf16.mxu0 %v496
          %560 = vmatpush1.bf16.msra.mxu0 %v495
          %561 = vmatprep.subr.bf16.mxu0 %v498
          %562 = vmatpush1.bf16.msra.mxu0 %v497
          %563 = vmatprep.subr.bf16.mxu0 %v500
          %564 = vmatpush1.bf16.msra.mxu0 %v499
          %565 = vmatprep.subr.bf16.mxu0 %v502
          %566 = vmatpush1.bf16.msra.mxu0 %v501
          %567 = vmatprep.subr.bf16.mxu0 %v504
          %568 = vmatpush1.bf16.msra.mxu0 %v503
          %569 = vmatprep.subr.bf16.mxu0 %v506
          %570 = vmatpush1.bf16.msra.mxu0 %v505
          %571 = vmatprep.subr.bf16.mxu0 %v508
          %572 = vmatpush1.bf16.msra.mxu0 %v507
          %573 = vmatprep.subr.bf16.mxu0 %v510
          %574 = vmatpush1.bf16.msra.mxu0 %v509
          %575 = vmatprep.subr.bf16.mxu0 %v512
          %576 = vmatpush1.bf16.msra.mxu0 %v511
          %577 = vmatprep.subr.bf16.mxu0 %v514
          %578 = vmatpush1.bf16.msra.mxu0 %v513
          %579 = vmatprep.subr.bf16.mxu0 %v516
          %580 = vmatpush1.bf16.msra.mxu0 %v515
          %581 = vmatprep.subr.bf16.mxu0 %v518
          %582 = vmatpush1.bf16.msra.mxu0 %v517
          %583 = vmatprep.subr.bf16.mxu0 %v520
          %584 = vmatpush1.bf16.msra.mxu0 %v519
          %585 = vmatprep.subr.bf16.mxu0 %v522
          %586 = vmatpush1.bf16.msra.mxu0 %v521
          %587 = vmatprep.subr.bf16.mxu0 %v524
          %588 = vmatpush1.bf16.msra.mxu0 %v523
          %589 = vmatprep.mubr.bf16.mxu0 %v394
          %590 = vmatmul.mubr.bf16.gmra.mrb[0].mxu0 %v393
          %v591 = vpop.f32.mrb[0].mxu0
          %v592 = vadd.f32 %v380, %v591
          %v593 = vpop.f32.mrb[0].mxu0
          %v594 = vadd.f32 %v384, %v593
          %v595 = vpop.f32.mrb[0].mxu0
          %v596 = vadd.f32 %v380, %v595
          %v597 = vpop.f32.mrb[0].mxu0
          %v598 = vadd.f32 %v384, %v597
          %599 = vdwg.mxu0
          %v600 = vld [vmem:[#allocation3] sm:$0x3]
          %v601 = vadd.f32 %v592, %v596
          %v602 = vrot.slane %v601, 4
          %v603 = vadd.f32 %v601, %v602
          %v604 = vrot.slane %v603, 2
          %v605 = vadd.f32 %v603, %v604
          %v606 = vrot.slane %v605, 1
          %v607 = vadd.f32 %v605, %v606
          %v608 = vadd.f32 %v594, %v598
          %v609 = vrot.slane %v608, 4
          %v610 = vadd.f32 %v608, %v609
          %v611 = vrot.slane %v610, 2
          %v612 = vadd.f32 %v610, %v611
          %v613 = vrot.slane %v612, 1
          %v614 = vadd.f32 %v612, %v613
          %v617 = vcombine.low %v607, %v614
          %v619 = vunpack.c.l.s4 1966171168
          %v620 = vunpack.c.0.s8 %v619
          %v621 = vlaneseq
          %v622 = vshrl.u32 %v621, 7
          %v623 = vsub.s32 %v620, %v622
          %v624 = vrot.slane %v617, %v623
          %v626 = vunpack.c.l.s4 1966171168
          %v627 = vunpack.c.0.s8 %v626
          %v628 = vlaneseq
          %v629 = vshrl.u32 %v628, 7
          %v630 = vsub.s32 %v627, %v629
          %v631 = vrot.slane %v624, %v630
          %v633 = vadd.f32 %v600, %v631
          %v634 = vlaneseq
          %vm635 = vcmp.ge.s32.totalorder %v634, 0
          %vm636 = vcmp.lt.s32.totalorder %v634, 256
          %vm637 = vmand %vm635, %vm636
          %638 = vst.msk [vmem:[#allocation3] sm:$0x3] %vm637, %v633
          %v639 = vld [vmem:[#allocation4] sm:$0x3]
          %v640 = vmul.f32 %v592, %v592
          %v641 = vmul.f32 %v594, %v594
          %v642 = vmul.f32 %v596, %v596
          %v643 = vmul.f32 %v598, %v598
          %v644 = vadd.f32 %v640, %v642
          %v645 = vrot.slane %v644, 4
          %v646 = vadd.f32 %v644, %v645
          %v647 = vrot.slane %v646, 2
          %v648 = vadd.f32 %v646, %v647
          %v649 = vrot.slane %v648, 1
          %v650 = vadd.f32 %v648, %v649
          %v651 = vadd.f32 %v641, %v643
          %v652 = vrot.slane %v651, 4
          %v653 = vadd.f32 %v651, %v652
          %v654 = vrot.slane %v653, 2
          %v655 = vadd.f32 %v653, %v654
          %v656 = vrot.slane %v655, 1
          %v657 = vadd.f32 %v655, %v656
          %v660 = vcombine.low %v650, %v657
          %v662 = vunpack.c.l.s4 1966171168
          %v663 = vunpack.c.0.s8 %v662
          %v664 = vlaneseq
          %v665 = vshrl.u32 %v664, 7
          %v666 = vsub.s32 %v663, %v665
          %v667 = vrot.slane %v660, %v666
          %v669 = vunpack.c.l.s4 1966171168
          %v670 = vunpack.c.0.s8 %v669
          %v671 = vlaneseq
          %v672 = vshrl.u32 %v671, 7
          %v673 = vsub.s32 %v670, %v672
          %v674 = vrot.slane %v667, %v673
          %v676 = vadd.f32 %v639, %v674
          %677 = vst.msk [vmem:[#allocation4] sm:$0x3] %vm637, %v676
          %v678 = vpack.c.bf16 %v596, %v592
          %v679 = vpack.c.bf16 %v598, %v594
          %s680 = sshra.s32 %s326, 4
          %s681 = sand.u32 %s326, 15
          %s682 = smul.u32 %s680, 2
          %s683 = smul.addr %s682, 8
          %s684 = scalar_lea.vmem [#allocation2], %s683
          %685 = vst [vmem:[%s684] sm:$0xff] %v678
          %686 = vst [vmem:[%s684 + $0x8] sm:$0xff] %v679
        $region60: #{tpu_custom_call.1} parent=43 // pred_fallthru
          _
        %p687 = scmp.eq.s32.totalorder %s28, 1
        // Predicated region
        $region65: #{tpu_custom_call.1} parent=43 // pred_check
          %p688 = pneg %p687
        $region66: #{tpu_custom_call.1} parent=43 // pred_check_branch
          %690 = sbr.rel (%p688) target = $region68
        $region67: #{tpu_custom_call.1} parent=43 // pred_region
          %p691 = scmp.eq.s32.totalorder %s29, 0
          // Predicated region
          $region69: #{tpu_custom_call.1} parent=67 // pred_check
            %p692 = pneg %p691
          $region70: #{tpu_custom_call.1} parent=67 // pred_check_branch
            %694 = sbr.rel (%p692) target = $region72
          $region71: #{tpu_custom_call.1} parent=67 // pred_region
            %v695 = vld [vmem:[#allocation3] sm:$0x3]
            %v696 = vld [vmem:[#allocation4] sm:$0x3]
            %v697 = vld [vmem:[%s2] sm:$0x3]
            %v698 = vmul.f32 %v697, 8.0
            %v699 = vsub.f32 %v695, %v698
            %v700 = vmul.f32 %v697, %v697
            %v701 = vmul.f32 %v700, 8.0
            %v702 = vsub.f32 %v696, %v701
            %v703 = vmul.f32 %v699, 0.025
            %v704 = vmul.f32 %v702, 0.025
            %v705 = vmul.f32 %v703, %v703
            %v706 = vsub.f32 %v704, %v705
            %v707 = vmax.f32 %v706, 0.0
            %v708 = vld [vmem:[%s3] sm:$0x3]
            %v709 = vadd.f32 %v707, 1e-05
            %v710 = vrsqrt.pop %v709
            %v711 = vmul.f32 %v708, %v710
            %v712 = vlaneseq
            %vm713 = vcmp.ge.s32.totalorder %v712, 0
            %vm714 = vcmp.lt.s32.totalorder %v712, 256
            %vm715 = vmand %vm713, %vm714
            %716 = vst.msk [vmem:[#allocation3] sm:$0x3] %vm715, %v711
            %v717 = vld [vmem:[%s4] sm:$0x3]
            %v718 = vmul.f32 %v703, %v711
            %v719 = vsub.f32 %v717, %v718
            %720 = vst.msk [vmem:[#allocation4] sm:$0x3] %vm715, %v719
          $region72: #{tpu_custom_call.1} parent=67 // pred_fallthru
            _
          %s721 = sshra.s32 %s326, 4
          %s722 = sand.u32 %s326, 15
          %s723 = smul.u32 %s721, 2
          %s724 = smul.addr %s723, 8
          %s725 = scalar_lea.vmem [#allocation2], %s724
          %v726 = vld [vmem:[%s725] sm:$0xff]
          %v727 = vld [vmem:[%s725 + $0x8] sm:$0xff]
          %v728 = vld [vmem:[#allocation3] sm:$0x3]
          %v729 = vunpack.c.l.bf16 %v726
          %v730 = vunpack.c.l.bf16 %v727
          %v731 = vunpack.c.h.bf16 %v726
          %v732 = vunpack.c.h.bf16 %v727
          %v734 = vlaneseq
          %v735 = vshrl.u32 %v734, 7
          %v736 = vsub.s32 0, %v735
          %v737 = vrot.slane %v728, %v736
          %v738 = vlaneseq
          %v739 = vshrl.u32 %v738, 7
          %v740 = vsub.s32 1, %v739
          %v741 = vrot.slane %v728, %v740
          %v744 = vmul.f32 %v729, %v737
          %v745 = vmul.f32 %v730, %v741
          %v746 = vmul.f32 %v731, %v737
          %v747 = vmul.f32 %v732, %v741
          %v748 = vld [vmem:[#allocation4] sm:$0x3]
          %v750 = vlaneseq
          %v751 = vshrl.u32 %v750, 7
          %v752 = vsub.s32 0, %v751
          %v753 = vrot.slane %v748, %v752
          %v754 = vlaneseq
          %v755 = vshrl.u32 %v754, 7
          %v756 = vsub.s32 1, %v755
          %v757 = vrot.slane %v748, %v756
          %v760 = vadd.f32 %v744, %v753
          %v761 = vadd.f32 %v745, %v757
          %v762 = vadd.f32 %v746, %v753
          %v763 = vadd.f32 %v747, %v757
          %v764 = vmax.f32 %v760, 0.0
          %v765 = vmax.f32 %v761, 0.0
          %v766 = vmax.f32 %v762, 0.0
          %v767 = vmax.f32 %v763, 0.0
          %v768 = vpack.c.bf16 %v766, %v764
          %v769 = vpack.c.bf16 %v767, %v765
          %v770 = vld [vmem:[#allocation10] sm:$0xf]
          %v771 = vld [vmem:[#allocation10 + $0x4] sm:$0xf]
          %v772 = vld [vmem:[#allocation10 + $0x8] sm:$0xf]
          %v773 = vld [vmem:[#allocation10 + $0xc] sm:$0xf]
          %v774 = vld [vmem:[#allocation10 + $0x10] sm:$0xf]
          %v775 = vld [vmem:[#allocation10 + $0x14] sm:$0xf]
          %v776 = vld [vmem:[#allocation10 + $0x18] sm:$0xf]
          %v777 = vld [vmem:[#allocation10 + $0x1c] sm:$0xf]
          %v778 = vld [vmem:[#allocation10 + $0x20] sm:$0xf]
          %v779 = vld [vmem:[#allocation10 + $0x24] sm:$0xf]
          %v780 = vld [vmem:[#allocation10 + $0x28] sm:$0xf]
          %v781 = vld [vmem:[#allocation10 + $0x2c] sm:$0xf]
          %v782 = vld [vmem:[#allocation10 + $0x30] sm:$0xf]
          %v783 = vld [vmem:[#allocation10 + $0x34] sm:$0xf]
          %v784 = vld [vmem:[#allocation10 + $0x38] sm:$0xf]
          %v785 = vld [vmem:[#allocation10 + $0x3c] sm:$0xf]
          %v786 = vld [vmem:[#allocation10 + $0x40] sm:$0xf]
          %v787 = vld [vmem:[#allocation10 + $0x44] sm:$0xf]
          %v788 = vld [vmem:[#allocation10 + $0x48] sm:$0xf]
          %v789 = vld [vmem:[#allocation10 + $0x4c] sm:$0xf]
          %v790 = vld [vmem:[#allocation10 + $0x50] sm:$0xf]
          %v791 = vld [vmem:[#allocation10 + $0x54] sm:$0xf]
          %v792 = vld [vmem:[#allocation10 + $0x58] sm:$0xf]
          %v793 = vld [vmem:[#allocation10 + $0x5c] sm:$0xf]
          %v794 = vld [vmem:[#allocation10 + $0x60] sm:$0xf]
          %v795 = vld [vmem:[#allocation10 + $0x64] sm:$0xf]
          %v796 = vld [vmem:[#allocation10 + $0x68] sm:$0xf]
          %v797 = vld [vmem:[#allocation10 + $0x6c] sm:$0xf]
          %v798 = vld [vmem:[#allocation10 + $0x70] sm:$0xf]
          %v799 = vld [vmem:[#allocation10 + $0x74] sm:$0xf]
          %v800 = vld [vmem:[#allocation10 + $0x78] sm:$0xf]
          %v801 = vld [vmem:[#allocation10 + $0x7c] sm:$0xf]
          %v834 = vunpack.c.l.b16 %v770
          %v835 = vunpack.c.l.b16 %v771
          %v836 = vunpack.c.l.b16 %v772
          %v837 = vunpack.c.l.b16 %v773
          %v838 = vunpack.c.l.b16 %v774
          %v839 = vunpack.c.l.b16 %v775
          %v840 = vunpack.c.l.b16 %v776
          %v841 = vunpack.c.l.b16 %v777
          %v842 = vunpack.c.l.b16 %v778
          %v843 = vunpack.c.l.b16 %v779
          %v844 = vunpack.c.l.b16 %v780
          %v845 = vunpack.c.l.b16 %v781
          %v846 = vunpack.c.l.b16 %v782
          %v847 = vunpack.c.l.b16 %v783
          %v848 = vunpack.c.l.b16 %v784
          %v849 = vunpack.c.l.b16 %v785
          %v850 = vunpack.c.l.b16 %v786
          %v851 = vunpack.c.l.b16 %v787
          %v852 = vunpack.c.l.b16 %v788
          %v853 = vunpack.c.l.b16 %v789
          %v854 = vunpack.c.l.b16 %v790
          %v855 = vunpack.c.l.b16 %v791
          %v856 = vunpack.c.l.b16 %v792
          %v857 = vunpack.c.l.b16 %v793
          %v858 = vunpack.c.l.b16 %v794
          %v859 = vunpack.c.l.b16 %v795
          %v860 = vunpack.c.l.b16 %v796
          %v861 = vunpack.c.l.b16 %v797
          %v862 = vunpack.c.l.b16 %v798
          %v863 = vunpack.c.l.b16 %v799
          %v864 = vunpack.c.l.b16 %v800
          %v865 = vunpack.c.l.b16 %v801
          %v866 = vpack.c.b16 %v835, %v834
          %v867 = vpack.c.b16 %v837, %v836
          %v868 = vpack.c.b16 %v839, %v838
          %v869 = vpack.c.b16 %v841, %v840
          %v870 = vpack.c.b16 %v843, %v842
          %v871 = vpack.c.b16 %v845, %v844
          %v872 = vpack.c.b16 %v847, %v846
          %v873 = vpack.c.b16 %v849, %v848
          %v874 = vpack.c.b16 %v851, %v850
          %v875 = vpack.c.b16 %v853, %v852
          %v876 = vpack.c.b16 %v855, %v854
          %v877 = vpack.c.b16 %v857, %v856
          %v878 = vpack.c.b16 %v859, %v858
          %v879 = vpack.c.b16 %v861, %v860
          %v880 = vpack.c.b16 %v863, %v862
          %v881 = vpack.c.b16 %v865, %v864
          %898 = vmatprep.subr.bf16.mxu0 0
          %899 = vmatpush1.bf16.msra.mxu0 %v866
          %900 = vmatprep.subr.bf16.mxu0 0
          %901 = vmatpush1.bf16.msra.mxu0 %v867
          %902 = vmatprep.subr.bf16.mxu0 0
          %903 = vmatpush1.bf16.msra.mxu0 %v868
          %904 = vmatprep.subr.bf16.mxu0 0
          %905 = vmatpush1.bf16.msra.mxu0 %v869
          %906 = vmatprep.subr.bf16.mxu0 0
          %907 = vmatpush1.bf16.msra.mxu0 %v870
          %908 = vmatprep.subr.bf16.mxu0 0
          %909 = vmatpush1.bf16.msra.mxu0 %v871
          %910 = vmatprep.subr.bf16.mxu0 0
          %911 = vmatpush1.bf16.msra.mxu0 %v872
          %912 = vmatprep.subr.bf16.mxu0 0
          %913 = vmatpush1.bf16.msra.mxu0 %v873
          %914 = vmatprep.subr.bf16.mxu0 0
          %915 = vmatpush1.bf16.msra.mxu0 %v874
          %916 = vmatprep.subr.bf16.mxu0 0
          %917 = vmatpush1.bf16.msra.mxu0 %v875
          %918 = vmatprep.subr.bf16.mxu0 0
          %919 = vmatpush1.bf16.msra.mxu0 %v876
          %920 = vmatprep.subr.bf16.mxu0 0
          %921 = vmatpush1.bf16.msra.mxu0 %v877
          %922 = vmatprep.subr.bf16.mxu0 0
          %923 = vmatpush1.bf16.msra.mxu0 %v878
          %924 = vmatprep.subr.bf16.mxu0 0
          %925 = vmatpush1.bf16.msra.mxu0 %v879
          %926 = vmatprep.subr.bf16.mxu0 0
          %927 = vmatpush1.bf16.msra.mxu0 %v880
          %928 = vmatprep.subr.bf16.mxu0 0
          %929 = vmatpush1.bf16.msra.mxu0 %v881
          %930 = vmatprep.mubr.bf16.mxu0 %v769
          %931 = vmatmul.mubr.bf16.gmra.mrb[0].mxu0 %v768
          %v932 = vpop.f32.mrb[0].mxu0
          %v933 = vadd.f32 0.0, %v932
          %v934 = vpop.f32.mrb[0].mxu0
          %v935 = vpop.f32.mrb[0].mxu0
          %v936 = vadd.f32 0.0, %v935
          %v937 = vpop.f32.mrb[0].mxu0
          %938 = vdwg.mxu0
          %v939 = vmul.f32 %v933, %v933
          %v940 = vmul.f32 %v936, %v936
          %941 = vadd.xlane.f32.xlu0 %v939
          %v942 = vpop.xlane.xlu0 %941
          %943 = vadd.xlane.f32.xlu0 %v940
          %v944 = vpop.xlane.xlu0 %943
          %v945 = vmax.f32 %v942, 1e-24
          %v946 = vmax.f32 %v944, 1e-24
          %v947 = vrsqrt.pop %v945
          %v948 = vrsqrt.pop %v946
          %v949 = vmul.f32 %v933, %v947
          %v950 = vmul.f32 %v936, %v948
          %951 = vst [vmem:[%s319] sm:$0xff] %v949
          %952 = vst [vmem:[%s319 + $0x8] sm:$0xff] %v950
        $region68: #{tpu_custom_call.1} parent=43 // pred_fallthru
          _
        %s953 = sand.u32 %s181, 1
        %s954 = scalar_lea.sflag [#allocation7], %s953
        %s955 = sand.u32 %s181, 1
        %s956 = smul.addr %s955, 16
        %s957 = scalar_lea.vmem [#allocation11], %s956
        // Predicated region
        $region73: #{tpu_custom_call.1} parent=43 // pred_check
          %p958 = pneg %p191
        $region74: #{tpu_custom_call.1} parent=43 // pred_check_branch
          %960 = sbr.rel (%p958) target = $region76
        $region75: #{tpu_custom_call.1} parent=43 // pred_region
          %s961 = smul.u32 %s28, %s29
          %s962 = smul.u32 2, %s961
          %s964 = ssub.s32 256, 256
          %965 = vsyncadd %s954, %s964
          %s966 = smul.addr %s962, 128
          %s967 = scalar_lea.hbm %s6, %s966
          %s968 = sshll.u32 %s957, 4
          %s969 = int_to_ptr.vmem [resolvable:$true] %s968
          %974 = dma.vmem_to_hbm [thread:$0]  %s969, 256, %s967, %s954, 128, 128, 8
        $region76: #{tpu_custom_call.1} parent=43 // pred_fallthru
          _
      $region44: #{tpu_custom_call.1} parent=5 // pred_fallthru
        _
      %p975 = scmp.le.s32.totalorder 2, %s19
      // Predicated region
      $region77: #{tpu_custom_call.1} parent=5 // pred_check
        %p976 = pneg %p975
      $region78: #{tpu_custom_call.1} parent=5 // pred_check_branch
        %978 = sbr.rel (%p976) target = $region80
      $region79: #{tpu_custom_call.1} parent=5 // pred_region
        %s979 = ssub.s32 %s19, 2
        // Predicated region
        $region81: #{tpu_custom_call.1} parent=79 // pred_check
          %p980 = pneg %p197
        $region82: #{tpu_custom_call.1} parent=79 // pred_check_branch
          %982 = sbr.rel (%p980) target = $region84
        $region83: #{tpu_custom_call.1} parent=79 // pred_region
          %s983 = sand.u32 %s182, 1
          %s984 = scalar_lea.sflag [#allocation7], %s983
          %s985 = sand.u32 %s182, 1
          %s986 = smul.addr %s985, 16
          %s987 = scalar_lea.vmem [#allocation11], %s986
          %988 = dma.done %s984, 256
        $region84: #{tpu_custom_call.1} parent=79 // pred_fallthru
          _
      $region80: #{tpu_custom_call.1} parent=5 // pred_fallthru
        _
    $region6: #{tpu_custom_call.1} parent=1 // loop_footer
      %s23 = sadd.s32 1, %s19
    $region7: #{tpu_custom_call.1} parent=1 // loop_footer_branch
      %18 = sbr.rel target = $region3
    $region8: #{tpu_custom_call.1} parent=1 // loop_exit
      _
    %989 = vsyncpa [#allocation6], 1
    %s990 = scalar_lea.sflag [#allocation6], 1
    %991 = vsyncpa %s990, 1
    %992 = vsyncpa [#allocation9], 1
    %993 = vsyncpa [#allocation7], 1
    %s994 = scalar_lea.sflag [#allocation7], 1
    %995 = vsyncpa %s994, 1

</llo_original>
